<compile_context>
chip_gen: v5e
topology: v5e:2x2
jax: 0.10.0
libtpu: 0.0.40
codegen_flags: <defaults>
</compile_context>

<pallas_src>
import functools

import jax
import jax.numpy as jnp
from jax.experimental import pallas as pl
from jax.experimental.pallas import tpu as pltpu

LN_EPS = 1e-5          # torch.nn.LayerNorm default


def _cdiv(a, b):
    return (a + b - 1) // b


def _round_up(x, m):
    return _cdiv(x, m) * m


def _apply_activation(name, v):
    """Static (trace-time) activation dispatch, computed in f32 on the VPU."""
    if name == "relu":
        return jnp.maximum(v, 0.0)
    if name == "gelu":
        return jax.nn.gelu(v)
    if name in ("silu", "swish"):
        return jax.nn.silu(v)
    if name == "tanh":
        return jnp.tanh(v)
    if name == "sigmoid":
        return jax.nn.sigmoid(v)
    raise ValueError(f"unsupported activation: {name}")


def _dense_layer_kernel(x_ref, w1_ref, gamma_ref, beta_ref, w2_ref, o_ref, *,
                        d_layer, activation):
    # ---- Linear 1 (no bias): bf16 operands on the MXU, f32 accumulate ----
    x = x_ref[...].astype(jnp.bfloat16)                       # [bm, d_in]
    h = jnp.dot(x, w1_ref[...],                               # w1: [d_in, d_layer] bf16 (resident)
                preferred_element_type=jnp.float32)           # [bm, d_layer] f32

    # ---- LayerNorm over d_layer (f32, centered variance — no cancellation) ----
    inv_d = jnp.float32(1.0 / d_layer)
    mean = jnp.sum(h, axis=-1, keepdims=True) * inv_d
    diff = h - mean
    var = jnp.sum(diff * diff, axis=-1, keepdims=True) * inv_d
    hn = diff * jax.lax.rsqrt(var + LN_EPS)                   # rsqrt -> EUP
    hn = hn * gamma_ref[...] + beta_ref[...]                  # gamma/beta: [1, d_layer] f32

    # ---- Activation (f32 on VPU), then bf16 for the second MXU matmul ----
    a = _apply_activation(activation, hn).astype(jnp.bfloat16)

    # ---- Linear 2 (no bias) ----
    out = jnp.dot(a, w2_ref[...],                             # w2: [d_layer, d_out] bf16 (resident)
                  preferred_element_type=jnp.float32)         # [bm, d_out]
    o_ref[...] = out.astype(o_ref.dtype)


def prepare_dense_layer_params(w1, gamma, beta, w2):
    """One-time (parameter-init) prep: transpose from torch [out, in] layout to
    row-major x @ W layout and cast the matmul weights to bf16.  No padding —
    weights are VMEM-resident and the kernel streams true-width tiles."""
    d_layer, d_in = w1.shape
    d_out = w2.shape[0]

    w1_t = w1.T.astype(jnp.bfloat16)                          # [d_in, d_layer]
    w2_t = w2.T.astype(jnp.bfloat16)                          # [d_layer, d_out]
    gamma_p = gamma.reshape(1, d_layer).astype(jnp.float32)
    beta_p = beta.reshape(1, d_layer).astype(jnp.float32)

    dims = dict(d_in=d_in, d_layer=d_layer, d_out=d_out)
    return (w1_t, gamma_p, beta_p, w2_t), dims


def _vmem_budget_and_limit():
    """Generation-aware VMEM sizing (v5e/v6e: 128 MiB physical, v7x: 64 MiB)."""
    physical = 64 * 1024 * 1024                               # conservative default
    try:
        info = pltpu.get_tpu_info()
        physical = int(getattr(info, "vmem_capacity_bytes", physical)) or physical
    except Exception:
        pass
    budget = int(physical * 0.70)                             # per-step working-set target
    limit = int(physical * 0.85)                              # scoped VMEM requested
    return budget, limit


def _is_two_tensorcore():
    """v7x has 2 TensorCores per chip; v5e/v6e have 1."""
    try:
        kind = jax.devices()[0].device_kind.lower()
        return "v7" in kind
    except Exception:
        return False


def dense_layer_forward(x, params, dims, *, activation="relu", bm=None):
    """x: [B, d_in] (f32 or bf16). Returns [B, d_out] in x.dtype."""
    w1_t, gamma_p, beta_p, w2_t = params
    B, d_in = x.shape
    assert d_in == dims["d_in"]
    d_layer, d_out = dims["d_layer"], dims["d_out"]
    itemsize = jnp.dtype(x.dtype).itemsize

    budget, vmem_limit = _vmem_budget_and_limit()
    two_tc = _is_two_tensorcore()

    # bf16 streams pack 2 rows/sublane -> tile rows in multiples of 16; else 8.
    row_mult = 16 if jnp.dtype(x.dtype) == jnp.dtype(jnp.bfloat16) else 8

    weight_bytes = 2 * (d_in * d_layer + d_layer * d_out) + 2 * d_layer * 4
    if weight_bytes > budget:
        # TODO(synk): weight-streaming fallback (tile d_layer as an "arbitrary"
        # grid axis with an f32 accumulator scratch) for this regime.
        raise NotImplementedError(
            f"resident weights ({weight_bytes} B) exceed the VMEM budget ({budget} B)")

    def vmem_bytes(tile, x_buffers):
        io = x_buffers * tile * d_in * itemsize + 2 * tile * d_out * itemsize
        interm = tile * (d_in + d_layer + d_out) * 2          # bf16 copies of x, a, out cast
        interm += 4 * tile * d_layer * 4                      # f32 h / diff / hn / temp
        interm += tile * d_out * 4                            # f32 matmul-2 result
        return io + weight_bytes + interm

    # --- pick the batch tile ---
    if bm is None:
        bm = min(1024, _round_up(B, row_mult))
        while bm > row_mult and vmem_bytes(bm, 2) > budget:
            bm //= 2
        bm = max(row_mult, (bm // row_mult) * row_mult)
        if two_tc and B > row_mult:
            # v7x: >=2 grid steps and an even step count so both TCs get equal work.
            if _cdiv(B, bm) == 1:
                bm = max(row_mult, _round_up(_cdiv(B, 2), row_mult))
            steps = _cdiv(B, bm)
            if steps > 1 and steps % 2 == 1:
                bm = max(row_mult, _round_up(_cdiv(B, steps + 1), row_mult))
    else:
        bm = max(row_mult, _round_up(bm, row_mult))
    bm = min(bm, _round_up(B, row_mult))

    n_steps = _cdiv(B, bm)
    grid = (n_steps,)

    # Deeper input pipelining when the grid is long enough and VMEM has headroom.
    x_buffers = 3 if (n_steps >= 3 and vmem_bytes(bm, 3) <= budget) else 2
    if x_buffers == 3:
        x_spec = pl.BlockSpec((bm, d_in), lambda i: (i, 0), pipeline_mode=pl.Buffered(3))
    else:
        x_spec = pl.BlockSpec((bm, d_in), lambda i: (i, 0))

    kernel = functools.partial(_dense_layer_kernel, d_layer=d_layer, activation=activation)

    flops = 2 * B * d_layer * (d_in + d_out)
    transcendentals = B + (0 if activation == "relu" else B * d_layer)
    bytes_accessed = (B * d_in * itemsize + w1_t.size * 2 + w2_t.size * 2
                      + (gamma_p.size + beta_p.size) * 4 + B * d_out * itemsize)

    out = pl.pallas_call(
        kernel,
        out_shape=jax.ShapeDtypeStruct((B, d_out), x.dtype),
        grid_spec=pltpu.PrefetchScalarGridSpec(
            num_scalar_prefetch=0,
            grid=grid,
            in_specs=[
                x_spec,                                                # streamed batch tiles
                pl.BlockSpec(memory_space=pltpu.MemorySpace.VMEM),     # w1: resident
                pl.BlockSpec(memory_space=pltpu.MemorySpace.VMEM),     # gamma
                pl.BlockSpec(memory_space=pltpu.MemorySpace.VMEM),     # beta
                pl.BlockSpec(memory_space=pltpu.MemorySpace.VMEM),     # w2: resident
            ],
            out_specs=pl.BlockSpec((bm, d_out), lambda i: (i, 0)),     # true-width output, no pad/slice
        ),
        compiler_params=pltpu.CompilerParams(
            dimension_semantics=("parallel",),
            vmem_limit_bytes=vmem_limit),
        cost_estimate=pl.CostEstimate(flops=flops, transcendentals=transcendentals,
                                      bytes_accessed=bytes_accessed),
    )(x, w1_t, gamma_p, beta_p, w2_t)

    return out


def dense_layer_reference(x, w1, gamma, beta, w2, activation="relu"):
    """Pure-JAX f32 reference matching PyTorch semantics."""
    h = x @ w1.T
    mean = jnp.mean(h, axis=-1, keepdims=True)
    var = jnp.mean((h - mean) ** 2, axis=-1, keepdims=True)
    h = (h - mean) / jnp.sqrt(var + LN_EPS)
    h = h * gamma + beta
    h = _apply_activation(activation, h)
    return h @ w2.T


if __name__ == "__main__":
    # Small shapes consistent with the module: d_in=32, d_layer=64, d_out=16.
    B, d_in, d_layer, d_out = 256, 32, 64, 16

    key = jax.random.PRNGKey(0)
    kx, kw1, kw2, kg, kb = jax.random.split(key, 5)

    x = jax.random.normal(kx, (B, d_in), dtype=jnp.float32)
    # torch.nn.Linear weight layout: [out_features, in_features]
    w1 = jax.random.normal(kw1, (d_layer, d_in), dtype=jnp.float32) * 0.1
    w2 = jax.random.normal(kw2, (d_out, d_layer), dtype=jnp.float32) * 0.1
    gamma = 1.0 + 0.1 * jax.random.normal(kg, (d_layer,), dtype=jnp.float32)
    beta = 0.1 * jax.random.normal(kb, (d_layer,), dtype=jnp.float32)

    params, dims = prepare_dense_layer_params(w1, gamma, beta, w2)   # init-time prep (once)

    # 1) Main case (relu).
    out = jax.block_until_ready(dense_layer_forward(x, params, dims, activation="relu"))
    ref = dense_layer_reference(x, w1, gamma, beta, w2, activation="relu")
    assert out.shape == (B, d_out)
    err = float(jnp.max(jnp.abs(out - ref)))
    assert jnp.allclose(out, ref, atol=5e-2, rtol=5e-2), f"relu mismatch, max abs err {err}"

    # 2) Partial tail tile (B not a multiple of the row tile) + non-relu activation.
    B2 = 100
    x2 = jax.random.normal(jax.random.PRNGKey(1), (B2, d_in), dtype=jnp.float32)
    out2 = jax.block_until_ready(dense_layer_forward(x2, params, dims, activation="gelu"))
    ref2 = dense_layer_reference(x2, w1, gamma, beta, w2, activation="gelu")
    assert out2.shape == (B2, d_out)
    err2 = float(jnp.max(jnp.abs(out2 - ref2)))
    assert jnp.allclose(out2, ref2, atol=5e-2, rtol=5e-2), f"gelu mismatch, max abs err {err2}"

    # 3) Multi-step grid with an explicit small tile (exercises Buffered(3) input pipelining).
    B3 = 640
    x3 = jax.random.normal(jax.random.PRNGKey(2), (B3, d_in), dtype=jnp.float32)
    out3 = jax.block_until_ready(dense_layer_forward(x3, params, dims, activation="relu", bm=128))
    ref3 = dense_layer_reference(x3, w1, gamma, beta, w2, activation="relu")
    assert out3.shape == (B3, d_out)
    err3 = float(jnp.max(jnp.abs(out3 - ref3)))
    assert jnp.allclose(out3, ref3, atol=5e-2, rtol=5e-2), f"tiled mismatch, max abs err {err3}"

    print("KERNEL_OK")
</pallas_src>

<mosaic_0001>
module attributes {stable_mosaic.version = 11 : i64} {
  func.func @_dense_layer_kernel(%arg0: i32, %arg1: memref<256x32xf32, #tpu.memory_space<vmem>>, %arg2: memref<32x64xbf16, #tpu.memory_space<vmem>>, %arg3: memref<1x64xf32, #tpu.memory_space<vmem>>, %arg4: memref<1x64xf32, #tpu.memory_space<vmem>>, %arg5: memref<64x16xbf16, #tpu.memory_space<vmem>>, %arg6: memref<256x16xf32, #tpu.memory_space<vmem>>) attributes {dimension_semantics = [#tpu.dimension_semantics<parallel>], iteration_bounds = array<i64: 1>, scalar_prefetch = 0 : i64, scratch_operands = 0 : i64, tpu.core_type = #tpu.core_type<tc>, window_params = [{transform_indices = @transform_0, window_bounds = array<i64: 256, 32>}, {pipeline_mode = #tpu.pipeline_mode<synchronous>, transform_indices = @transform_1, window_bounds = array<i64: 32, 64>}, {pipeline_mode = #tpu.pipeline_mode<synchronous>, transform_indices = @transform_2, window_bounds = array<i64: 1, 64>}, {pipeline_mode = #tpu.pipeline_mode<synchronous>, transform_indices = @transform_3, window_bounds = array<i64: 1, 64>}, {pipeline_mode = #tpu.pipeline_mode<synchronous>, transform_indices = @transform_4, window_bounds = array<i64: 64, 16>}, {transform_indices = @transform_5, window_bounds = array<i64: 256, 16>}]} {
    %c0 = arith.constant 0 : index
    %c0_0 = arith.constant 0 : index
    %0 = vector.load %arg1[%c0, %c0_0] : memref<256x32xf32, #tpu.memory_space<vmem>>, vector<256x32xf32>
    %1 = arith.truncf %0 : vector<256x32xf32> to vector<256x32xbf16>
    %c0_1 = arith.constant 0 : index
    %c0_2 = arith.constant 0 : index
    %2 = vector.load %arg2[%c0_1, %c0_2] : memref<32x64xbf16, #tpu.memory_space<vmem>>, vector<32x64xbf16>
    %cst = arith.constant dense<0.000000e+00> : vector<256x64xf32>
    %3 = tpu.matmul %1, %2, %cst {dimension_numbers = #tpu.dot_dimension_numbers<[1], [0], [0], [1], [0, 0, 1, 1], [], []>} : vector<256x32xbf16>, vector<32x64xbf16>, vector<256x64xf32> -> vector<256x64xf32>
    %cst_3 = arith.constant dense<0.000000e+00> : vector<256xf32>
    %4 = vector.multi_reduction <add>, %3, %cst_3 [1] : vector<256x64xf32> to vector<256xf32>
    %5 = vector.shape_cast %4 : vector<256xf32> to vector<256x1xf32>
    %cst_4 = arith.constant 1.562500e-02 : f32
    %6 = vector.broadcast %cst_4 : f32 to vector<256x1xf32>
    %7 = arith.mulf %5, %6 : vector<256x1xf32>
    %8 = vector.broadcast %7 : vector<256x1xf32> to vector<256x64xf32>
    %9 = arith.subf %3, %8 : vector<256x64xf32>
    %10 = arith.mulf %9, %9 : vector<256x64xf32>
    %cst_5 = arith.constant dense<0.000000e+00> : vector<256xf32>
    %11 = vector.multi_reduction <add>, %10, %cst_5 [1] : vector<256x64xf32> to vector<256xf32>
    %12 = vector.shape_cast %11 : vector<256xf32> to vector<256x1xf32>
    %cst_6 = arith.constant 1.562500e-02 : f32
    %13 = vector.broadcast %cst_6 : f32 to vector<256x1xf32>
    %14 = arith.mulf %12, %13 : vector<256x1xf32>
    %cst_7 = arith.constant 9.99999974E-6 : f32
    %15 = vector.broadcast %cst_7 : f32 to vector<256x1xf32>
    %16 = arith.addf %14, %15 : vector<256x1xf32>
    %17 = math.rsqrt %16 : vector<256x1xf32>
    %18 = vector.broadcast %17 : vector<256x1xf32> to vector<256x64xf32>
    %19 = arith.mulf %9, %18 : vector<256x64xf32>
    %c0_8 = arith.constant 0 : index
    %c0_9 = arith.constant 0 : index
    %20 = vector.load %arg3[%c0_8, %c0_9] : memref<1x64xf32, #tpu.memory_space<vmem>>, vector<1x64xf32>
    %21 = vector.broadcast %20 : vector<1x64xf32> to vector<256x64xf32>
    %22 = arith.mulf %19, %21 : vector<256x64xf32>
    %c0_10 = arith.constant 0 : index
    %c0_11 = arith.constant 0 : index
    %23 = vector.load %arg4[%c0_10, %c0_11] : memref<1x64xf32, #tpu.memory_space<vmem>>, vector<1x64xf32>
    %24 = vector.broadcast %23 : vector<1x64xf32> to vector<256x64xf32>
    %25 = arith.addf %22, %24 : vector<256x64xf32>
    %cst_12 = arith.constant 0.000000e+00 : f32
    %26 = vector.broadcast %cst_12 : f32 to vector<256x64xf32>
    %27 = arith.maximumf %25, %26 : vector<256x64xf32>
    %28 = arith.truncf %27 : vector<256x64xf32> to vector<256x64xbf16>
    %c0_13 = arith.constant 0 : index
    %c0_14 = arith.constant 0 : index
    %29 = vector.load %arg5[%c0_13, %c0_14] : memref<64x16xbf16, #tpu.memory_space<vmem>>, vector<64x16xbf16>
    %cst_15 = arith.constant dense<0.000000e+00> : vector<256x16xf32>
    %30 = tpu.matmul %28, %29, %cst_15 {dimension_numbers = #tpu.dot_dimension_numbers<[1], [0], [0], [1], [0, 0, 1, 1], [], []>} : vector<256x64xbf16>, vector<64x16xbf16>, vector<256x16xf32> -> vector<256x16xf32>
    %c0_16 = arith.constant 0 : index
    %c0_17 = arith.constant 0 : index
    %31 = vector.load %arg6[%c0_16, %c0_17] : memref<256x16xf32, #tpu.memory_space<vmem>>, vector<256x16xf32>
    tpu.vector_store %arg6[%c0_16, %c0_17], %30 {strides = array<i32>} : memref<256x16xf32, #tpu.memory_space<vmem>>, vector<256x16xf32>,
    return
  }
  func.func @transform_0(%arg0: i32) -> (i32, i32) {
    %c0_i32 = arith.constant 0 : i32
    %c0_i32_0 = arith.constant 0 : i32
    return %arg0, %c0_i32 : i32, i32
  }
  func.func @transform_1(%arg0: i32) -> (i32, i32) {
    %c0_i32 = arith.constant 0 : i32
    %c0_i32_0 = arith.constant 0 : i32
    %c0_i32_1 = arith.constant 0 : i32
    return %c0_i32, %c0_i32_0 : i32, i32
  }
  func.func @transform_2(%arg0: i32) -> (i32, i32) {
    %c0_i32 = arith.constant 0 : i32
    %c0_i32_0 = arith.constant 0 : i32
    %c0_i32_1 = arith.constant 0 : i32
    return %c0_i32, %c0_i32_0 : i32, i32
  }
  func.func @transform_3(%arg0: i32) -> (i32, i32) {
    %c0_i32 = arith.constant 0 : i32
    %c0_i32_0 = arith.constant 0 : i32
    %c0_i32_1 = arith.constant 0 : i32
    return %c0_i32, %c0_i32_0 : i32, i32
  }
  func.func @transform_4(%arg0: i32) -> (i32, i32) {
    %c0_i32 = arith.constant 0 : i32
    %c0_i32_0 = arith.constant 0 : i32
    %c0_i32_1 = arith.constant 0 : i32
    return %c0_i32, %c0_i32_0 : i32, i32
  }
  func.func @transform_5(%arg0: i32) -> (i32, i32) {
    %c0_i32 = arith.constant 0 : i32
    %c0_i32_0 = arith.constant 0 : i32
    return %arg0, %c0_i32 : i32, i32
  }
}

</mosaic_0001>

<llo_original>
// kernel: tpu_custom_call.1
$region0: #{tpu_custom_call.1}
  #allocation0 [shape = 'u32[]', space=smem, size = 0x4, offset = 0x4, fixed_abs, tag = 'smem constant byte address 0x4 - core index']
  #allocation1 [shape = 'u32[72,128]{1,0:T(1,128)}', space=vmem, size = 0x9000, scoped, tag = 'internal scratch']
  %s0 = inlined_call_operand.vmem [shape: f32[256,32], index: 0, kind: input, shape index: {}]
  %s1 = inlined_call_operand.vmem [shape: bf16[32,64], index: 1, kind: input, shape index: {}]
  %s2 = inlined_call_operand.vmem [shape: f32[1,64], index: 2, kind: input, shape index: {}]
  %s3 = inlined_call_operand.vmem [shape: f32[1,64], index: 3, kind: input, shape index: {}]
  %s4 = inlined_call_operand.vmem [shape: bf16[64,16], index: 4, kind: input, shape index: {}]
  %s5 = inlined_call_operand.vmem [shape: f32[256,16], index: 5, kind: output, shape index: {}]
  %s6 = sld [smem:[#allocation0]]
  $region30: #{tpu_custom_call.1} parent=0
    _
  %s8 = ssub.s32 1, %s6
  %s9 = scalar_select 0, %s8, %s6
  // Predicated region
  $region2: #{tpu_custom_call.1} parent=0 // pred_check
    _
  $region3: #{tpu_custom_call.1} parent=0 // pred_check_branch
    %11 = sbr.rel (0) target = $region5
  $region4: #{tpu_custom_call.1} parent=0 // pred_region
    _
  $region5: #{tpu_custom_call.1} parent=0 // pred_fallthru
    _
  // Predicated region
  $region6: #{tpu_custom_call.1} parent=0 // pred_check
    _
  $region7: #{tpu_custom_call.1} parent=0 // pred_check_branch
    %13 = sbr.rel (0) target = $region9
  $region8: #{tpu_custom_call.1} parent=0 // pred_region
    _
  $region9: #{tpu_custom_call.1} parent=0 // pred_fallthru
    _
  // Predicated region
  $region10: #{tpu_custom_call.1} parent=0 // pred_check
    _
  $region11: #{tpu_custom_call.1} parent=0 // pred_check_branch
    %15 = sbr.rel (0) target = $region13
  $region12: #{tpu_custom_call.1} parent=0 // pred_region
    _
  $region13: #{tpu_custom_call.1} parent=0 // pred_fallthru
    _
  // Predicated region
  $region14: #{tpu_custom_call.1} parent=0 // pred_check
    _
  $region15: #{tpu_custom_call.1} parent=0 // pred_check_branch
    %17 = sbr.rel (0) target = $region17
  $region16: #{tpu_custom_call.1} parent=0 // pred_region
    _
  $region17: #{tpu_custom_call.1} parent=0 // pred_fallthru
    _
  // Predicated region
  $region18: #{tpu_custom_call.1} parent=0 // pred_check
    _
  $region19: #{tpu_custom_call.1} parent=0 // pred_check_branch
    %19 = sbr.rel (0) target = $region21
  $region20: #{tpu_custom_call.1} parent=0 // pred_region
    _
  $region21: #{tpu_custom_call.1} parent=0 // pred_fallthru
    _
  %v21 = vld [vmem:[%s0] sm:$0xff]
  %v22 = vld [vmem:[%s0 + $0x8] sm:$0xff]
  %v23 = vld [vmem:[%s0 + $0x10] sm:$0xff]
  %v24 = vld [vmem:[%s0 + $0x18] sm:$0xff]
  %v25 = vld [vmem:[%s0 + $0x20] sm:$0xff]
  %v26 = vld [vmem:[%s0 + $0x28] sm:$0xff]
  %v27 = vld [vmem:[%s0 + $0x30] sm:$0xff]
  %v28 = vld [vmem:[%s0 + $0x38] sm:$0xff]
  %v29 = vld [vmem:[%s0 + $0x40] sm:$0xff]
  %v30 = vld [vmem:[%s0 + $0x48] sm:$0xff]
  %v31 = vld [vmem:[%s0 + $0x50] sm:$0xff]
  %v32 = vld [vmem:[%s0 + $0x58] sm:$0xff]
  %v33 = vld [vmem:[%s0 + $0x60] sm:$0xff]
  %v34 = vld [vmem:[%s0 + $0x68] sm:$0xff]
  %v35 = vld [vmem:[%s0 + $0x70] sm:$0xff]
  %v36 = vld [vmem:[%s0 + $0x78] sm:$0xff]
  %v37 = vld [vmem:[%s0 + $0x80] sm:$0xff]
  %v38 = vld [vmem:[%s0 + $0x88] sm:$0xff]
  %v39 = vld [vmem:[%s0 + $0x90] sm:$0xff]
  %v40 = vld [vmem:[%s0 + $0x98] sm:$0xff]
  %v41 = vld [vmem:[%s0 + $0xa0] sm:$0xff]
  %v42 = vld [vmem:[%s0 + $0xa8] sm:$0xff]
  %v43 = vld [vmem:[%s0 + $0xb0] sm:$0xff]
  %v44 = vld [vmem:[%s0 + $0xb8] sm:$0xff]
  %v45 = vld [vmem:[%s0 + $0xc0] sm:$0xff]
  %v46 = vld [vmem:[%s0 + $0xc8] sm:$0xff]
  %v47 = vld [vmem:[%s0 + $0xd0] sm:$0xff]
  %v48 = vld [vmem:[%s0 + $0xd8] sm:$0xff]
  %v49 = vld [vmem:[%s0 + $0xe0] sm:$0xff]
  %v50 = vld [vmem:[%s0 + $0xe8] sm:$0xff]
  %v51 = vld [vmem:[%s0 + $0xf0] sm:$0xff]
  %v52 = vld [vmem:[%s0 + $0xf8] sm:$0xff]
  %v53 = vpack.c.bf16 %v22, %v21
  %v54 = vpack.c.bf16 %v24, %v23
  %v55 = vpack.c.bf16 %v26, %v25
  %v56 = vpack.c.bf16 %v28, %v27
  %v57 = vpack.c.bf16 %v30, %v29
  %v58 = vpack.c.bf16 %v32, %v31
  %v59 = vpack.c.bf16 %v34, %v33
  %v60 = vpack.c.bf16 %v36, %v35
  %v61 = vpack.c.bf16 %v38, %v37
  %v62 = vpack.c.bf16 %v40, %v39
  %v63 = vpack.c.bf16 %v42, %v41
  %v64 = vpack.c.bf16 %v44, %v43
  %v65 = vpack.c.bf16 %v46, %v45
  %v66 = vpack.c.bf16 %v48, %v47
  %v67 = vpack.c.bf16 %v50, %v49
  %v68 = vpack.c.bf16 %v52, %v51
  %v69 = vld [vmem:[%s1] sm:$0xf]
  %v70 = vld [vmem:[%s1 + $0x4] sm:$0xf]
  %v71 = vld [vmem:[%s1 + $0x8] sm:$0xf]
  %v72 = vld [vmem:[%s1 + $0xc] sm:$0xf]
  %v77 = vunpack.c.l.b16 %v69
  %v78 = vunpack.c.l.b16 %v70
  %v79 = vunpack.c.l.b16 %v71
  %v80 = vunpack.c.l.b16 %v72
  %v81 = vpack.c.b16 %v78, %v77
  %v82 = vpack.c.b16 %v80, %v79
  %vm85 = vcmask 261120
  %v87 = vsel %vm85, %v53, 0
  %v90 = vsel %vm85, %v54, 0
  %v93 = vsel %vm85, %v55, 0
  %v96 = vsel %vm85, %v56, 0
  %v99 = vsel %vm85, %v57, 0
  %v102 = vsel %vm85, %v58, 0
  %v105 = vsel %vm85, %v59, 0
  %v108 = vsel %vm85, %v60, 0
  %v111 = vsel %vm85, %v61, 0
  %v114 = vsel %vm85, %v62, 0
  %v117 = vsel %vm85, %v63, 0
  %v120 = vsel %vm85, %v64, 0
  %v123 = vsel %vm85, %v65, 0
  %v126 = vsel %vm85, %v66, 0
  %v129 = vsel %vm85, %v67, 0
  %v132 = vsel %vm85, %v68, 0
  %134 = vmatpush.bf16.msra.mxu0 0
  %135 = vmatpush.bf16.msra.mxu0 0
  %136 = vmatpush.bf16.msra.mxu0 0
  %137 = vmatpush.bf16.msra.mxu0 0
  %138 = vmatpush.bf16.msra.mxu0 0
  %139 = vmatpush.bf16.msra.mxu0 0
  %140 = vmatpush.bf16.msra.mxu0 %v82
  %141 = vmatpush.bf16.msra.mxu0 %v81
  %142 = vmatmul.bf16.gmra.mxu0 %v87
  %v143 = vpop.f32.mrf.mxu0
  %v144 = vadd.f32 0.0, %v143
  %v145 = vpop.f32.mrf.mxu0
  %v146 = vadd.f32 0.0, %v145
  %147 = vmatmul.bf16.gmra.mxu0 %v90
  %v148 = vpop.f32.mrf.mxu0
  %v149 = vadd.f32 0.0, %v148
  %v150 = vpop.f32.mrf.mxu0
  %v151 = vadd.f32 0.0, %v150
  %152 = vmatmul.bf16.gmra.mxu0 %v93
  %v153 = vpop.f32.mrf.mxu0
  %v154 = vadd.f32 0.0, %v153
  %v155 = vpop.f32.mrf.mxu0
  %v156 = vadd.f32 0.0, %v155
  %157 = vmatmul.bf16.gmra.mxu0 %v96
  %v158 = vpop.f32.mrf.mxu0
  %v159 = vadd.f32 0.0, %v158
  %v160 = vpop.f32.mrf.mxu0
  %v161 = vadd.f32 0.0, %v160
  %162 = vmatmul.bf16.gmra.mxu0 %v99
  %v163 = vpop.f32.mrf.mxu0
  %v164 = vadd.f32 0.0, %v163
  %v165 = vpop.f32.mrf.mxu0
  %v166 = vadd.f32 0.0, %v165
  %167 = vmatmul.bf16.gmra.mxu0 %v102
  %v168 = vpop.f32.mrf.mxu0
  %v169 = vadd.f32 0.0, %v168
  %v170 = vpop.f32.mrf.mxu0
  %v171 = vadd.f32 0.0, %v170
  %172 = vmatmul.bf16.gmra.mxu0 %v105
  %v173 = vpop.f32.mrf.mxu0
  %v174 = vadd.f32 0.0, %v173
  %v175 = vpop.f32.mrf.mxu0
  %v176 = vadd.f32 0.0, %v175
  %177 = vmatmul.bf16.gmra.mxu0 %v108
  %v178 = vpop.f32.mrf.mxu0
  %v179 = vadd.f32 0.0, %v178
  %v180 = vpop.f32.mrf.mxu0
  %v181 = vadd.f32 0.0, %v180
  %182 = vmatmul.bf16.gmra.mxu0 %v111
  %v183 = vpop.f32.mrf.mxu0
  %v184 = vadd.f32 0.0, %v183
  %v185 = vpop.f32.mrf.mxu0
  %v186 = vadd.f32 0.0, %v185
  %187 = vmatmul.bf16.gmra.mxu0 %v114
  %v188 = vpop.f32.mrf.mxu0
  %v189 = vadd.f32 0.0, %v188
  %v190 = vpop.f32.mrf.mxu0
  %v191 = vadd.f32 0.0, %v190
  %192 = vmatmul.bf16.gmra.mxu0 %v117
  %v193 = vpop.f32.mrf.mxu0
  %v194 = vadd.f32 0.0, %v193
  %v195 = vpop.f32.mrf.mxu0
  %v196 = vadd.f32 0.0, %v195
  %197 = vmatmul.bf16.gmra.mxu0 %v120
  %v198 = vpop.f32.mrf.mxu0
  %v199 = vadd.f32 0.0, %v198
  %v200 = vpop.f32.mrf.mxu0
  %v201 = vadd.f32 0.0, %v200
  %202 = vmatmul.bf16.gmra.mxu0 %v123
  %v203 = vpop.f32.mrf.mxu0
  %v204 = vadd.f32 0.0, %v203
  %v205 = vpop.f32.mrf.mxu0
  %v206 = vadd.f32 0.0, %v205
  %207 = vmatmul.bf16.gmra.mxu0 %v126
  %v208 = vpop.f32.mrf.mxu0
  %v209 = vadd.f32 0.0, %v208
  %v210 = vpop.f32.mrf.mxu0
  %v211 = vadd.f32 0.0, %v210
  %212 = vmatmul.bf16.gmra.mxu0 %v129
  %v213 = vpop.f32.mrf.mxu0
  %v214 = vadd.f32 0.0, %v213
  %v215 = vpop.f32.mrf.mxu0
  %v216 = vadd.f32 0.0, %v215
  %217 = vmatmul.bf16.gmra.mxu0 %v132
  %v218 = vpop.f32.mrf.mxu0
  %v219 = vadd.f32 0.0, %v218
  %v220 = vpop.f32.mrf.mxu0
  %v221 = vadd.f32 0.0, %v220
  %222 = vdwg.mxu0
  %vm223 = vcmask 523264
  %v224 = vsel %vm223, %v144, 0.0
  %225 = vadd.xlane.f32.xlu0 %v224
  %v226 = vpop.xlane.xlu0 %225
  %v227 = vsel %vm223, %v146, 0.0
  %228 = vadd.xlane.f32.xlu0 %v227
  %v229 = vpop.xlane.xlu0 %228
  %v230 = vsel %vm223, %v149, 0.0
  %231 = vadd.xlane.f32.xlu0 %v230
  %v232 = vpop.xlane.xlu0 %231
  %v233 = vsel %vm223, %v151, 0.0
  %234 = vadd.xlane.f32.xlu0 %v233
  %v235 = vpop.xlane.xlu0 %234
  %v236 = vsel %vm223, %v154, 0.0
  %237 = vadd.xlane.f32.xlu0 %v236
  %v238 = vpop.xlane.xlu0 %237
  %v239 = vsel %vm223, %v156, 0.0
  %240 = vadd.xlane.f32.xlu0 %v239
  %v241 = vpop.xlane.xlu0 %240
  %v242 = vsel %vm223, %v159, 0.0
  %243 = vadd.xlane.f32.xlu0 %v242
  %v244 = vpop.xlane.xlu0 %243
  %v245 = vsel %vm223, %v161, 0.0
  %246 = vadd.xlane.f32.xlu0 %v245
  %v247 = vpop.xlane.xlu0 %246
  %v248 = vsel %vm223, %v164, 0.0
  %249 = vadd.xlane.f32.xlu0 %v248
  %v250 = vpop.xlane.xlu0 %249
  %v251 = vsel %vm223, %v166, 0.0
  %252 = vadd.xlane.f32.xlu0 %v251
  %v253 = vpop.xlane.xlu0 %252
  %v254 = vsel %vm223, %v169, 0.0
  %255 = vadd.xlane.f32.xlu0 %v254
  %v256 = vpop.xlane.xlu0 %255
  %v257 = vsel %vm223, %v171, 0.0
  %258 = vadd.xlane.f32.xlu0 %v257
  %v259 = vpop.xlane.xlu0 %258
  %v260 = vsel %vm223, %v174, 0.0
  %261 = vadd.xlane.f32.xlu0 %v260
  %v262 = vpop.xlane.xlu0 %261
  %v263 = vsel %vm223, %v176, 0.0
  %264 = vadd.xlane.f32.xlu0 %v263
  %v265 = vpop.xlane.xlu0 %264
  %v266 = vsel %vm223, %v179, 0.0
  %267 = vadd.xlane.f32.xlu0 %v266
  %v268 = vpop.xlane.xlu0 %267
  %v269 = vsel %vm223, %v181, 0.0
  %270 = vadd.xlane.f32.xlu0 %v269
  %v271 = vpop.xlane.xlu0 %270
  %v272 = vsel %vm223, %v184, 0.0
  %273 = vadd.xlane.f32.xlu0 %v272
  %v274 = vpop.xlane.xlu0 %273
  %v275 = vsel %vm223, %v186, 0.0
  %276 = vadd.xlane.f32.xlu0 %v275
  %v277 = vpop.xlane.xlu0 %276
  %v278 = vsel %vm223, %v189, 0.0
  %279 = vadd.xlane.f32.xlu0 %v278
  %v280 = vpop.xlane.xlu0 %279
  %v281 = vsel %vm223, %v191, 0.0
  %282 = vadd.xlane.f32.xlu0 %v281
  %v283 = vpop.xlane.xlu0 %282
  %v284 = vsel %vm223, %v194, 0.0
  %285 = vadd.xlane.f32.xlu0 %v284
  %v286 = vpop.xlane.xlu0 %285
  %v287 = vsel %vm223, %v196, 0.0
  %288 = vadd.xlane.f32.xlu0 %v287
  %v289 = vpop.xlane.xlu0 %288
  %v290 = vsel %vm223, %v199, 0.0
  %291 = vadd.xlane.f32.xlu0 %v290
  %v292 = vpop.xlane.xlu0 %291
  %v293 = vsel %vm223, %v201, 0.0
  %294 = vadd.xlane.f32.xlu0 %v293
  %v295 = vpop.xlane.xlu0 %294
  %v296 = vsel %vm223, %v204, 0.0
  %297 = vadd.xlane.f32.xlu0 %v296
  %v298 = vpop.xlane.xlu0 %297
  %v299 = vsel %vm223, %v206, 0.0
  %300 = vadd.xlane.f32.xlu0 %v299
  %v301 = vpop.xlane.xlu0 %300
  %v302 = vsel %vm223, %v209, 0.0
  %303 = vadd.xlane.f32.xlu0 %v302
  %v304 = vpop.xlane.xlu0 %303
  %v305 = vsel %vm223, %v211, 0.0
  %306 = vadd.xlane.f32.xlu0 %v305
  %v307 = vpop.xlane.xlu0 %306
  %v308 = vsel %vm223, %v214, 0.0
  %309 = vadd.xlane.f32.xlu0 %v308
  %v310 = vpop.xlane.xlu0 %309
  %v311 = vsel %vm223, %v216, 0.0
  %312 = vadd.xlane.f32.xlu0 %v311
  %v313 = vpop.xlane.xlu0 %312
  %v314 = vsel %vm223, %v219, 0.0
  %315 = vadd.xlane.f32.xlu0 %v314
  %v316 = vpop.xlane.xlu0 %315
  %v317 = vsel %vm223, %v221, 0.0
  %318 = vadd.xlane.f32.xlu0 %v317
  %v319 = vpop.xlane.xlu0 %318
  %v320 = vmul.f32 %v226, 0.015625
  %v321 = vmul.f32 %v229, 0.015625
  %v322 = vmul.f32 %v232, 0.015625
  %v323 = vmul.f32 %v235, 0.015625
  %v324 = vmul.f32 %v238, 0.015625
  %v325 = vmul.f32 %v241, 0.015625
  %v326 = vmul.f32 %v244, 0.015625
  %v327 = vmul.f32 %v247, 0.015625
  %v328 = vmul.f32 %v250, 0.015625
  %v329 = vmul.f32 %v253, 0.015625
  %v330 = vmul.f32 %v256, 0.015625
  %v331 = vmul.f32 %v259, 0.015625
  %v332 = vmul.f32 %v262, 0.015625
  %v333 = vmul.f32 %v265, 0.015625
  %v334 = vmul.f32 %v268, 0.015625
  %v335 = vmul.f32 %v271, 0.015625
  %v336 = vmul.f32 %v274, 0.015625
  %v337 = vmul.f32 %v277, 0.015625
  %v338 = vmul.f32 %v280, 0.015625
  %v339 = vmul.f32 %v283, 0.015625
  %v340 = vmul.f32 %v286, 0.015625
  %v341 = vmul.f32 %v289, 0.015625
  %v342 = vmul.f32 %v292, 0.015625
  %v343 = vmul.f32 %v295, 0.015625
  %v344 = vmul.f32 %v298, 0.015625
  %v345 = vmul.f32 %v301, 0.015625
  %v346 = vmul.f32 %v304, 0.015625
  %v347 = vmul.f32 %v307, 0.015625
  %v348 = vmul.f32 %v310, 0.015625
  %v349 = vmul.f32 %v313, 0.015625
  %v350 = vmul.f32 %v316, 0.015625
  %v351 = vmul.f32 %v319, 0.015625
  %v352 = vsub.f32 %v144, %v320
  %v353 = vsub.f32 %v146, %v321
  %v354 = vsub.f32 %v149, %v322
  %v355 = vsub.f32 %v151, %v323
  %v356 = vsub.f32 %v154, %v324
  %v357 = vsub.f32 %v156, %v325
  %v358 = vsub.f32 %v159, %v326
  %v359 = vsub.f32 %v161, %v327
  %v360 = vsub.f32 %v164, %v328
  %v361 = vsub.f32 %v166, %v329
  %v362 = vsub.f32 %v169, %v330
  %v363 = vsub.f32 %v171, %v331
  %v364 = vsub.f32 %v174, %v332
  %v365 = vsub.f32 %v176, %v333
  %v366 = vsub.f32 %v179, %v334
  %v367 = vsub.f32 %v181, %v335
  %v368 = vsub.f32 %v184, %v336
  %v369 = vsub.f32 %v186, %v337
  %v370 = vsub.f32 %v189, %v338
  %v371 = vsub.f32 %v191, %v339
  %v372 = vsub.f32 %v194, %v340
  %v373 = vsub.f32 %v196, %v341
  %v374 = vsub.f32 %v199, %v342
  %v375 = vsub.f32 %v201, %v343
  %v376 = vsub.f32 %v204, %v344
  %v377 = vsub.f32 %v206, %v345
  %v378 = vsub.f32 %v209, %v346
  %v379 = vsub.f32 %v211, %v347
  %v380 = vsub.f32 %v214, %v348
  %v381 = vsub.f32 %v216, %v349
  %v382 = vsub.f32 %v219, %v350
  %v383 = vsub.f32 %v221, %v351
  %v384 = vmul.f32 %v352, %v352
  %v385 = vmul.f32 %v353, %v353
  %v386 = vmul.f32 %v354, %v354
  %v387 = vmul.f32 %v355, %v355
  %v388 = vmul.f32 %v356, %v356
  %v389 = vmul.f32 %v357, %v357
  %v390 = vmul.f32 %v358, %v358
  %v391 = vmul.f32 %v359, %v359
  %v392 = vmul.f32 %v360, %v360
  %v393 = vmul.f32 %v361, %v361
  %v394 = vmul.f32 %v362, %v362
  %v395 = vmul.f32 %v363, %v363
  %v396 = vmul.f32 %v364, %v364
  %v397 = vmul.f32 %v365, %v365
  %v398 = vmul.f32 %v366, %v366
  %v399 = vmul.f32 %v367, %v367
  %v400 = vmul.f32 %v368, %v368
  %v401 = vmul.f32 %v369, %v369
  %v402 = vmul.f32 %v370, %v370
  %v403 = vmul.f32 %v371, %v371
  %v404 = vmul.f32 %v372, %v372
  %v405 = vmul.f32 %v373, %v373
  %v406 = vmul.f32 %v374, %v374
  %v407 = vmul.f32 %v375, %v375
  %v408 = vmul.f32 %v376, %v376
  %v409 = vmul.f32 %v377, %v377
  %v410 = vmul.f32 %v378, %v378
  %v411 = vmul.f32 %v379, %v379
  %v412 = vmul.f32 %v380, %v380
  %v413 = vmul.f32 %v381, %v381
  %v414 = vmul.f32 %v382, %v382
  %v415 = vmul.f32 %v383, %v383
  %v416 = vsel %vm223, %v384, 0.0
  %417 = vadd.xlane.f32.xlu0 %v416
  %v418 = vpop.xlane.xlu0 %417
  %v419 = vsel %vm223, %v385, 0.0
  %420 = vadd.xlane.f32.xlu0 %v419
  %v421 = vpop.xlane.xlu0 %420
  %v422 = vsel %vm223, %v386, 0.0
  %423 = vadd.xlane.f32.xlu0 %v422
  %v424 = vpop.xlane.xlu0 %423
  %v425 = vsel %vm223, %v387, 0.0
  %426 = vadd.xlane.f32.xlu0 %v425
  %v427 = vpop.xlane.xlu0 %426
  %v428 = vsel %vm223, %v388, 0.0
  %429 = vadd.xlane.f32.xlu0 %v428
  %v430 = vpop.xlane.xlu0 %429
  %v431 = vsel %vm223, %v389, 0.0
  %432 = vadd.xlane.f32.xlu0 %v431
  %v433 = vpop.xlane.xlu0 %432
  %v434 = vsel %vm223, %v390, 0.0
  %435 = vadd.xlane.f32.xlu0 %v434
  %v436 = vpop.xlane.xlu0 %435
  %v437 = vsel %vm223, %v391, 0.0
  %438 = vadd.xlane.f32.xlu0 %v437
  %v439 = vpop.xlane.xlu0 %438
  %v440 = vsel %vm223, %v392, 0.0
  %441 = vadd.xlane.f32.xlu0 %v440
  %v442 = vpop.xlane.xlu0 %441
  %v443 = vsel %vm223, %v393, 0.0
  %444 = vadd.xlane.f32.xlu0 %v443
  %v445 = vpop.xlane.xlu0 %444
  %v446 = vsel %vm223, %v394, 0.0
  %447 = vadd.xlane.f32.xlu0 %v446
  %v448 = vpop.xlane.xlu0 %447
  %v449 = vsel %vm223, %v395, 0.0
  %450 = vadd.xlane.f32.xlu0 %v449
  %v451 = vpop.xlane.xlu0 %450
  %v452 = vsel %vm223, %v396, 0.0
  %453 = vadd.xlane.f32.xlu0 %v452
  %v454 = vpop.xlane.xlu0 %453
  %v455 = vsel %vm223, %v397, 0.0
  %456 = vadd.xlane.f32.xlu0 %v455
  %v457 = vpop.xlane.xlu0 %456
  %v458 = vsel %vm223, %v398, 0.0
  %459 = vadd.xlane.f32.xlu0 %v458
  %v460 = vpop.xlane.xlu0 %459
  %v461 = vsel %vm223, %v399, 0.0
  %462 = vadd.xlane.f32.xlu0 %v461
  %v463 = vpop.xlane.xlu0 %462
  %v464 = vsel %vm223, %v400, 0.0
  %465 = vadd.xlane.f32.xlu0 %v464
  %v466 = vpop.xlane.xlu0 %465
  %v467 = vsel %vm223, %v401, 0.0
  %468 = vadd.xlane.f32.xlu0 %v467
  %v469 = vpop.xlane.xlu0 %468
  %v470 = vsel %vm223, %v402, 0.0
  %471 = vadd.xlane.f32.xlu0 %v470
  %v472 = vpop.xlane.xlu0 %471
  %v473 = vsel %vm223, %v403, 0.0
  %474 = vadd.xlane.f32.xlu0 %v473
  %v475 = vpop.xlane.xlu0 %474
  %v476 = vsel %vm223, %v404, 0.0
  %477 = vadd.xlane.f32.xlu0 %v476
  %v478 = vpop.xlane.xlu0 %477
  %v479 = vsel %vm223, %v405, 0.0
  %480 = vadd.xlane.f32.xlu0 %v479
  %v481 = vpop.xlane.xlu0 %480
  %v482 = vsel %vm223, %v406, 0.0
  %483 = vadd.xlane.f32.xlu0 %v482
  %v484 = vpop.xlane.xlu0 %483
  %v485 = vsel %vm223, %v407, 0.0
  %486 = vadd.xlane.f32.xlu0 %v485
  %v487 = vpop.xlane.xlu0 %486
  %v488 = vsel %vm223, %v408, 0.0
  %489 = vadd.xlane.f32.xlu0 %v488
  %v490 = vpop.xlane.xlu0 %489
  %v491 = vsel %vm223, %v409, 0.0
  %492 = vadd.xlane.f32.xlu0 %v491
  %v493 = vpop.xlane.xlu0 %492
  %v494 = vsel %vm223, %v410, 0.0
  %495 = vadd.xlane.f32.xlu0 %v494
  %v496 = vpop.xlane.xlu0 %495
  %v497 = vsel %vm223, %v411, 0.0
  %498 = vadd.xlane.f32.xlu0 %v497
  %v499 = vpop.xlane.xlu0 %498
  %v500 = vsel %vm223, %v412, 0.0
  %501 = vadd.xlane.f32.xlu0 %v500
  %v502 = vpop.xlane.xlu0 %501
  %v503 = vsel %vm223, %v413, 0.0
  %504 = vadd.xlane.f32.xlu0 %v503
  %v505 = vpop.xlane.xlu0 %504
  %v506 = vsel %vm223, %v414, 0.0
  %507 = vadd.xlane.f32.xlu0 %v506
  %v508 = vpop.xlane.xlu0 %507
  %v509 = vsel %vm223, %v415, 0.0
  %510 = vadd.xlane.f32.xlu0 %v509
  %v511 = vpop.xlane.xlu0 %510
  %v512 = vmul.f32 %v418, 0.015625
  %v513 = vmul.f32 %v421, 0.015625
  %v514 = vmul.f32 %v424, 0.015625
  %v515 = vmul.f32 %v427, 0.015625
  %v516 = vmul.f32 %v430, 0.015625
  %v517 = vmul.f32 %v433, 0.015625
  %v518 = vmul.f32 %v436, 0.015625
  %v519 = vmul.f32 %v439, 0.015625
  %v520 = vmul.f32 %v442, 0.015625
  %v521 = vmul.f32 %v445, 0.015625
  %v522 = vmul.f32 %v448, 0.015625
  %v523 = vmul.f32 %v451, 0.015625
  %v524 = vmul.f32 %v454, 0.015625
  %v525 = vmul.f32 %v457, 0.015625
  %v526 = vmul.f32 %v460, 0.015625
  %v527 = vmul.f32 %v463, 0.015625
  %v528 = vmul.f32 %v466, 0.015625
  %v529 = vmul.f32 %v469, 0.015625
  %v530 = vmul.f32 %v472, 0.015625
  %v531 = vmul.f32 %v475, 0.015625
  %v532 = vmul.f32 %v478, 0.015625
  %v533 = vmul.f32 %v481, 0.015625
  %v534 = vmul.f32 %v484, 0.015625
  %v535 = vmul.f32 %v487, 0.015625
  %v536 = vmul.f32 %v490, 0.015625
  %v537 = vmul.f32 %v493, 0.015625
  %v538 = vmul.f32 %v496, 0.015625
  %v539 = vmul.f32 %v499, 0.015625
  %v540 = vmul.f32 %v502, 0.015625
  %v541 = vmul.f32 %v505, 0.015625
  %v542 = vmul.f32 %v508, 0.015625
  %v543 = vmul.f32 %v511, 0.015625
  %v544 = vadd.f32 %v512, 1e-05
  %v545 = vadd.f32 %v513, 1e-05
  %v546 = vadd.f32 %v514, 1e-05
  %v547 = vadd.f32 %v515, 1e-05
  %v548 = vadd.f32 %v516, 1e-05
  %v549 = vadd.f32 %v517, 1e-05
  %v550 = vadd.f32 %v518, 1e-05
  %v551 = vadd.f32 %v519, 1e-05
  %v552 = vadd.f32 %v520, 1e-05
  %v553 = vadd.f32 %v521, 1e-05
  %v554 = vadd.f32 %v522, 1e-05
  %v555 = vadd.f32 %v523, 1e-05
  %v556 = vadd.f32 %v524, 1e-05
  %v557 = vadd.f32 %v525, 1e-05
  %v558 = vadd.f32 %v526, 1e-05
  %v559 = vadd.f32 %v527, 1e-05
  %v560 = vadd.f32 %v528, 1e-05
  %v561 = vadd.f32 %v529, 1e-05
  %v562 = vadd.f32 %v530, 1e-05
  %v563 = vadd.f32 %v531, 1e-05
  %v564 = vadd.f32 %v532, 1e-05
  %v565 = vadd.f32 %v533, 1e-05
  %v566 = vadd.f32 %v534, 1e-05
  %v567 = vadd.f32 %v535, 1e-05
  %v568 = vadd.f32 %v536, 1e-05
  %v569 = vadd.f32 %v537, 1e-05
  %v570 = vadd.f32 %v538, 1e-05
  %v571 = vadd.f32 %v539, 1e-05
  %v572 = vadd.f32 %v540, 1e-05
  %v573 = vadd.f32 %v541, 1e-05
  %v574 = vadd.f32 %v542, 1e-05
  %v575 = vadd.f32 %v543, 1e-05
  %v576 = vrsqrt.pop %v544
  %v577 = vmul.f32 %v576, %v544
  %v578 = vmul.f32 %v577, %v576
  %v579 = vmul.f32 0.5, %v578
  %v580 = vsub.f32 1.5, %v579
  %v581 = vmul.f32 %v576, %v580
  %vm582 = vweird.f32 %v544
  %vm583 = vweird.f32 %v576
  %vm584 = vmor %vm582, %vm583
  %v585 = vsel %vm584, %v576, %v581
  %v586 = vrsqrt.pop %v545
  %v587 = vmul.f32 %v586, %v545
  %v588 = vmul.f32 %v587, %v586
  %v589 = vmul.f32 0.5, %v588
  %v590 = vsub.f32 1.5, %v589
  %v591 = vmul.f32 %v586, %v590
  %vm592 = vweird.f32 %v545
  %vm593 = vweird.f32 %v586
  %vm594 = vmor %vm592, %vm593
  %v595 = vsel %vm594, %v586, %v591
  %v596 = vrsqrt.pop %v546
  %v597 = vmul.f32 %v596, %v546
  %v598 = vmul.f32 %v597, %v596
  %v599 = vmul.f32 0.5, %v598
  %v600 = vsub.f32 1.5, %v599
  %v601 = vmul.f32 %v596, %v600
  %vm602 = vweird.f32 %v546
  %vm603 = vweird.f32 %v596
  %vm604 = vmor %vm602, %vm603
  %v605 = vsel %vm604, %v596, %v601
  %v606 = vrsqrt.pop %v547
  %v607 = vmul.f32 %v606, %v547
  %v608 = vmul.f32 %v607, %v606
  %v609 = vmul.f32 0.5, %v608
  %v610 = vsub.f32 1.5, %v609
  %v611 = vmul.f32 %v606, %v610
  %vm612 = vweird.f32 %v547
  %vm613 = vweird.f32 %v606
  %vm614 = vmor %vm612, %vm613
  %v615 = vsel %vm614, %v606, %v611
  %v616 = vrsqrt.pop %v548
  %v617 = vmul.f32 %v616, %v548
  %v618 = vmul.f32 %v617, %v616
  %v619 = vmul.f32 0.5, %v618
  %v620 = vsub.f32 1.5, %v619
  %v621 = vmul.f32 %v616, %v620
  %vm622 = vweird.f32 %v548
  %vm623 = vweird.f32 %v616
  %vm624 = vmor %vm622, %vm623
  %v625 = vsel %vm624, %v616, %v621
  %v626 = vrsqrt.pop %v549
  %v627 = vmul.f32 %v626, %v549
  %v628 = vmul.f32 %v627, %v626
  %v629 = vmul.f32 0.5, %v628
  %v630 = vsub.f32 1.5, %v629
  %v631 = vmul.f32 %v626, %v630
  %vm632 = vweird.f32 %v549
  %vm633 = vweird.f32 %v626
  %vm634 = vmor %vm632, %vm633
  %v635 = vsel %vm634, %v626, %v631
  %v636 = vrsqrt.pop %v550
  %v637 = vmul.f32 %v636, %v550
  %v638 = vmul.f32 %v637, %v636
  %v639 = vmul.f32 0.5, %v638
  %v640 = vsub.f32 1.5, %v639
  %v641 = vmul.f32 %v636, %v640
  %vm642 = vweird.f32 %v550
  %vm643 = vweird.f32 %v636
  %vm644 = vmor %vm642, %vm643
  %v645 = vsel %vm644, %v636, %v641
  %v646 = vrsqrt.pop %v551
  %v647 = vmul.f32 %v646, %v551
  %v648 = vmul.f32 %v647, %v646
  %v649 = vmul.f32 0.5, %v648
  %v650 = vsub.f32 1.5, %v649
  %v651 = vmul.f32 %v646, %v650
  %vm652 = vweird.f32 %v551
  %vm653 = vweird.f32 %v646
  %vm654 = vmor %vm652, %vm653
  %v655 = vsel %vm654, %v646, %v651
  %v656 = vrsqrt.pop %v552
  %v657 = vmul.f32 %v656, %v552
  %v658 = vmul.f32 %v657, %v656
  %v659 = vmul.f32 0.5, %v658
  %v660 = vsub.f32 1.5, %v659
  %v661 = vmul.f32 %v656, %v660
  %vm662 = vweird.f32 %v552
  %vm663 = vweird.f32 %v656
  %vm664 = vmor %vm662, %vm663
  %v665 = vsel %vm664, %v656, %v661
  %v666 = vrsqrt.pop %v553
  %v667 = vmul.f32 %v666, %v553
  %v668 = vmul.f32 %v667, %v666
  %v669 = vmul.f32 0.5, %v668
  %v670 = vsub.f32 1.5, %v669
  %v671 = vmul.f32 %v666, %v670
  %vm672 = vweird.f32 %v553
  %vm673 = vweird.f32 %v666
  %vm674 = vmor %vm672, %vm673
  %v675 = vsel %vm674, %v666, %v671
  %v676 = vrsqrt.pop %v554
  %v677 = vmul.f32 %v676, %v554
  %v678 = vmul.f32 %v677, %v676
  %v679 = vmul.f32 0.5, %v678
  %v680 = vsub.f32 1.5, %v679
  %v681 = vmul.f32 %v676, %v680
  %vm682 = vweird.f32 %v554
  %vm683 = vweird.f32 %v676
  %vm684 = vmor %vm682, %vm683
  %v685 = vsel %vm684, %v676, %v681
  %v686 = vrsqrt.pop %v555
  %v687 = vmul.f32 %v686, %v555
  %v688 = vmul.f32 %v687, %v686
  %v689 = vmul.f32 0.5, %v688
  %v690 = vsub.f32 1.5, %v689
  %v691 = vmul.f32 %v686, %v690
  %vm692 = vweird.f32 %v555
  %vm693 = vweird.f32 %v686
  %vm694 = vmor %vm692, %vm693
  %v695 = vsel %vm694, %v686, %v691
  %v696 = vrsqrt.pop %v556
  %v697 = vmul.f32 %v696, %v556
  %v698 = vmul.f32 %v697, %v696
  %v699 = vmul.f32 0.5, %v698
  %v700 = vsub.f32 1.5, %v699
  %v701 = vmul.f32 %v696, %v700
  %vm702 = vweird.f32 %v556
  %vm703 = vweird.f32 %v696
  %vm704 = vmor %vm702, %vm703
  %v705 = vsel %vm704, %v696, %v701
  %v706 = vrsqrt.pop %v557
  %v707 = vmul.f32 %v706, %v557
  %v708 = vmul.f32 %v707, %v706
  %v709 = vmul.f32 0.5, %v708
  %v710 = vsub.f32 1.5, %v709
  %v711 = vmul.f32 %v706, %v710
  %vm712 = vweird.f32 %v557
  %vm713 = vweird.f32 %v706
  %vm714 = vmor %vm712, %vm713
  %v715 = vsel %vm714, %v706, %v711
  %v716 = vrsqrt.pop %v558
  %v717 = vmul.f32 %v716, %v558
  %v718 = vmul.f32 %v717, %v716
  %v719 = vmul.f32 0.5, %v718
  %v720 = vsub.f32 1.5, %v719
  %v721 = vmul.f32 %v716, %v720
  %vm722 = vweird.f32 %v558
  %vm723 = vweird.f32 %v716
  %vm724 = vmor %vm722, %vm723
  %v725 = vsel %vm724, %v716, %v721
  %v726 = vrsqrt.pop %v559
  %v727 = vmul.f32 %v726, %v559
  %v728 = vmul.f32 %v727, %v726
  %v729 = vmul.f32 0.5, %v728
  %v730 = vsub.f32 1.5, %v729
  %v731 = vmul.f32 %v726, %v730
  %vm732 = vweird.f32 %v559
  %vm733 = vweird.f32 %v726
  %vm734 = vmor %vm732, %vm733
  %v735 = vsel %vm734, %v726, %v731
  %v736 = vrsqrt.pop %v560
  %v737 = vmul.f32 %v736, %v560
  %v738 = vmul.f32 %v737, %v736
  %v739 = vmul.f32 0.5, %v738
  %v740 = vsub.f32 1.5, %v739
  %v741 = vmul.f32 %v736, %v740
  %vm742 = vweird.f32 %v560
  %vm743 = vweird.f32 %v736
  %vm744 = vmor %vm742, %vm743
  %v745 = vsel %vm744, %v736, %v741
  %v746 = vrsqrt.pop %v561
  %v747 = vmul.f32 %v746, %v561
  %v748 = vmul.f32 %v747, %v746
  %v749 = vmul.f32 0.5, %v748
  %v750 = vsub.f32 1.5, %v749
  %v751 = vmul.f32 %v746, %v750
  %vm752 = vweird.f32 %v561
  %vm753 = vweird.f32 %v746
  %vm754 = vmor %vm752, %vm753
  %v755 = vsel %vm754, %v746, %v751
  %v756 = vrsqrt.pop %v562
  %v757 = vmul.f32 %v756, %v562
  %v758 = vmul.f32 %v757, %v756
  %v759 = vmul.f32 0.5, %v758
  %v760 = vsub.f32 1.5, %v759
  %v761 = vmul.f32 %v756, %v760
  %vm762 = vweird.f32 %v562
  %vm763 = vweird.f32 %v756
  %vm764 = vmor %vm762, %vm763
  %v765 = vsel %vm764, %v756, %v761
  %v766 = vrsqrt.pop %v563
  %v767 = vmul.f32 %v766, %v563
  %v768 = vmul.f32 %v767, %v766
  %v769 = vmul.f32 0.5, %v768
  %v770 = vsub.f32 1.5, %v769
  %v771 = vmul.f32 %v766, %v770
  %vm772 = vweird.f32 %v563
  %vm773 = vweird.f32 %v766
  %vm774 = vmor %vm772, %vm773
  %v775 = vsel %vm774, %v766, %v771
  %v776 = vrsqrt.pop %v564
  %v777 = vmul.f32 %v776, %v564
  %v778 = vmul.f32 %v777, %v776
  %v779 = vmul.f32 0.5, %v778
  %v780 = vsub.f32 1.5, %v779
  %v781 = vmul.f32 %v776, %v780
  %vm782 = vweird.f32 %v564
  %vm783 = vweird.f32 %v776
  %vm784 = vmor %vm782, %vm783
  %v785 = vsel %vm784, %v776, %v781
  %v786 = vrsqrt.pop %v565
  %v787 = vmul.f32 %v786, %v565
  %v788 = vmul.f32 %v787, %v786
  %v789 = vmul.f32 0.5, %v788
  %v790 = vsub.f32 1.5, %v789
  %v791 = vmul.f32 %v786, %v790
  %vm792 = vweird.f32 %v565
  %vm793 = vweird.f32 %v786
  %vm794 = vmor %vm792, %vm793
  %v795 = vsel %vm794, %v786, %v791
  %v796 = vrsqrt.pop %v566
  %v797 = vmul.f32 %v796, %v566
  %v798 = vmul.f32 %v797, %v796
  %v799 = vmul.f32 0.5, %v798
  %v800 = vsub.f32 1.5, %v799
  %v801 = vmul.f32 %v796, %v800
  %vm802 = vweird.f32 %v566
  %vm803 = vweird.f32 %v796
  %vm804 = vmor %vm802, %vm803
  %v805 = vsel %vm804, %v796, %v801
  %v806 = vrsqrt.pop %v567
  %v807 = vmul.f32 %v806, %v567
  %v808 = vmul.f32 %v807, %v806
  %v809 = vmul.f32 0.5, %v808
  %v810 = vsub.f32 1.5, %v809
  %v811 = vmul.f32 %v806, %v810
  %vm812 = vweird.f32 %v567
  %vm813 = vweird.f32 %v806
  %vm814 = vmor %vm812, %vm813
  %v815 = vsel %vm814, %v806, %v811
  %v816 = vrsqrt.pop %v568
  %v817 = vmul.f32 %v816, %v568
  %v818 = vmul.f32 %v817, %v816
  %v819 = vmul.f32 0.5, %v818
  %v820 = vsub.f32 1.5, %v819
  %v821 = vmul.f32 %v816, %v820
  %vm822 = vweird.f32 %v568
  %vm823 = vweird.f32 %v816
  %vm824 = vmor %vm822, %vm823
  %v825 = vsel %vm824, %v816, %v821
  %v826 = vrsqrt.pop %v569
  %v827 = vmul.f32 %v826, %v569
  %v828 = vmul.f32 %v827, %v826
  %v829 = vmul.f32 0.5, %v828
  %v830 = vsub.f32 1.5, %v829
  %v831 = vmul.f32 %v826, %v830
  %vm832 = vweird.f32 %v569
  %vm833 = vweird.f32 %v826
  %vm834 = vmor %vm832, %vm833
  %v835 = vsel %vm834, %v826, %v831
  %v836 = vrsqrt.pop %v570
  %v837 = vmul.f32 %v836, %v570
  %v838 = vmul.f32 %v837, %v836
  %v839 = vmul.f32 0.5, %v838
  %v840 = vsub.f32 1.5, %v839
  %v841 = vmul.f32 %v836, %v840
  %vm842 = vweird.f32 %v570
  %vm843 = vweird.f32 %v836
  %vm844 = vmor %vm842, %vm843
  %v845 = vsel %vm844, %v836, %v841
  %v846 = vrsqrt.pop %v571
  %v847 = vmul.f32 %v846, %v571
  %v848 = vmul.f32 %v847, %v846
  %v849 = vmul.f32 0.5, %v848
  %v850 = vsub.f32 1.5, %v849
  %v851 = vmul.f32 %v846, %v850
  %vm852 = vweird.f32 %v571
  %vm853 = vweird.f32 %v846
  %vm854 = vmor %vm852, %vm853
  %v855 = vsel %vm854, %v846, %v851
  %v856 = vrsqrt.pop %v572
  %v857 = vmul.f32 %v856, %v572
  %v858 = vmul.f32 %v857, %v856
  %v859 = vmul.f32 0.5, %v858
  %v860 = vsub.f32 1.5, %v859
  %v861 = vmul.f32 %v856, %v860
  %vm862 = vweird.f32 %v572
  %vm863 = vweird.f32 %v856
  %vm864 = vmor %vm862, %vm863
  %v865 = vsel %vm864, %v856, %v861
  %v866 = vrsqrt.pop %v573
  %v867 = vmul.f32 %v866, %v573
  %v868 = vmul.f32 %v867, %v866
  %v869 = vmul.f32 0.5, %v868
  %v870 = vsub.f32 1.5, %v869
  %v871 = vmul.f32 %v866, %v870
  %vm872 = vweird.f32 %v573
  %vm873 = vweird.f32 %v866
  %vm874 = vmor %vm872, %vm873
  %v875 = vsel %vm874, %v866, %v871
  %v876 = vrsqrt.pop %v574
  %v877 = vmul.f32 %v876, %v574
  %v878 = vmul.f32 %v877, %v876
  %v879 = vmul.f32 0.5, %v878
  %v880 = vsub.f32 1.5, %v879
  %v881 = vmul.f32 %v876, %v880
  %vm882 = vweird.f32 %v574
  %vm883 = vweird.f32 %v876
  %vm884 = vmor %vm882, %vm883
  %v885 = vsel %vm884, %v876, %v881
  %v886 = vrsqrt.pop %v575
  %v887 = vmul.f32 %v886, %v575
  %v888 = vmul.f32 %v887, %v886
  %v889 = vmul.f32 0.5, %v888
  %v890 = vsub.f32 1.5, %v889
  %v891 = vmul.f32 %v886, %v890
  %vm892 = vweird.f32 %v575
  %vm893 = vweird.f32 %v886
  %vm894 = vmor %vm892, %vm893
  %v895 = vsel %vm894, %v886, %v891
  %v896 = vmul.f32 %v352, %v585
  %v897 = vmul.f32 %v353, %v595
  %v898 = vmul.f32 %v354, %v605
  %v899 = vmul.f32 %v355, %v615
  %v900 = vmul.f32 %v356, %v625
  %v901 = vmul.f32 %v357, %v635
  %v902 = vmul.f32 %v358, %v645
  %v903 = vmul.f32 %v359, %v655
  %v904 = vmul.f32 %v360, %v665
  %v905 = vmul.f32 %v361, %v675
  %v906 = vmul.f32 %v362, %v685
  %v907 = vmul.f32 %v363, %v695
  %v908 = vmul.f32 %v364, %v705
  %v909 = vmul.f32 %v365, %v715
  %v910 = vmul.f32 %v366, %v725
  %v911 = vmul.f32 %v367, %v735
  %v912 = vmul.f32 %v368, %v745
  %v913 = vmul.f32 %v369, %v755
  %v914 = vmul.f32 %v370, %v765
  %v915 = vmul.f32 %v371, %v775
  %v916 = vmul.f32 %v372, %v785
  %v917 = vmul.f32 %v373, %v795
  %v918 = vmul.f32 %v374, %v805
  %v919 = vmul.f32 %v375, %v815
  %v920 = vmul.f32 %v376, %v825
  %v921 = vmul.f32 %v377, %v835
  %v922 = vmul.f32 %v378, %v845
  %v923 = vmul.f32 %v379, %v855
  %v924 = vmul.f32 %v380, %v865
  %v925 = vmul.f32 %v381, %v875
  %v926 = vmul.f32 %v382, %v885
  %v927 = vmul.f32 %v383, %v895
  %v928 = vld [vmem:[%s2] sm:$0x1]
  %v930 = vperm.slane %v928, 0
  %v932 = vmul.f32 %v896, %v930
  %v933 = vmul.f32 %v897, %v930
  %v934 = vmul.f32 %v898, %v930
  %v935 = vmul.f32 %v899, %v930
  %v936 = vmul.f32 %v900, %v930
  %v937 = vmul.f32 %v901, %v930
  %v938 = vmul.f32 %v902, %v930
  %v939 = vmul.f32 %v903, %v930
  %v940 = vmul.f32 %v904, %v930
  %v941 = vmul.f32 %v905, %v930
  %v942 = vmul.f32 %v906, %v930
  %v943 = vmul.f32 %v907, %v930
  %v944 = vmul.f32 %v908, %v930
  %v945 = vmul.f32 %v909, %v930
  %v946 = vmul.f32 %v910, %v930
  %v947 = vmul.f32 %v911, %v930
  %v948 = vmul.f32 %v912, %v930
  %v949 = vmul.f32 %v913, %v930
  %v950 = vmul.f32 %v914, %v930
  %v951 = vmul.f32 %v915, %v930
  %v952 = vmul.f32 %v916, %v930
  %v953 = vmul.f32 %v917, %v930
  %v954 = vmul.f32 %v918, %v930
  %v955 = vmul.f32 %v919, %v930
  %v956 = vmul.f32 %v920, %v930
  %v957 = vmul.f32 %v921, %v930
  %v958 = vmul.f32 %v922, %v930
  %v959 = vmul.f32 %v923, %v930
  %v960 = vmul.f32 %v924, %v930
  %v961 = vmul.f32 %v925, %v930
  %v962 = vmul.f32 %v926, %v930
  %v963 = vmul.f32 %v927, %v930
  %v964 = vld [vmem:[%s3] sm:$0x1]
  %v966 = vperm.slane %v964, 0
  %v968 = vadd.f32 %v932, %v966
  %v969 = vadd.f32 %v933, %v966
  %v970 = vadd.f32 %v934, %v966
  %v971 = vadd.f32 %v935, %v966
  %v972 = vadd.f32 %v936, %v966
  %v973 = vadd.f32 %v937, %v966
  %v974 = vadd.f32 %v938, %v966
  %v975 = vadd.f32 %v939, %v966
  %v976 = vadd.f32 %v940, %v966
  %v977 = vadd.f32 %v941, %v966
  %v978 = vadd.f32 %v942, %v966
  %v979 = vadd.f32 %v943, %v966
  %v980 = vadd.f32 %v944, %v966
  %v981 = vadd.f32 %v945, %v966
  %v982 = vadd.f32 %v946, %v966
  %v983 = vadd.f32 %v947, %v966
  %v984 = vadd.f32 %v948, %v966
  %v985 = vadd.f32 %v949, %v966
  %v986 = vadd.f32 %v950, %v966
  %v987 = vadd.f32 %v951, %v966
  %v988 = vadd.f32 %v952, %v966
  %v989 = vadd.f32 %v953, %v966
  %v990 = vadd.f32 %v954, %v966
  %v991 = vadd.f32 %v955, %v966
  %v992 = vadd.f32 %v956, %v966
  %v993 = vadd.f32 %v957, %v966
  %v994 = vadd.f32 %v958, %v966
  %v995 = vadd.f32 %v959, %v966
  %v996 = vadd.f32 %v960, %v966
  %v997 = vadd.f32 %v961, %v966
  %v998 = vadd.f32 %v962, %v966
  %v999 = vadd.f32 %v963, %v966
  %v1000 = vmax.f32 %v968, 0.0
  %v1001 = vmax.f32 %v969, 0.0
  %v1002 = vmax.f32 %v970, 0.0
  %v1003 = vmax.f32 %v971, 0.0
  %v1004 = vmax.f32 %v972, 0.0
  %v1005 = vmax.f32 %v973, 0.0
  %v1006 = vmax.f32 %v974, 0.0
  %v1007 = vmax.f32 %v975, 0.0
  %v1008 = vmax.f32 %v976, 0.0
  %v1009 = vmax.f32 %v977, 0.0
  %v1010 = vmax.f32 %v978, 0.0
  %v1011 = vmax.f32 %v979, 0.0
  %v1012 = vmax.f32 %v980, 0.0
  %v1013 = vmax.f32 %v981, 0.0
  %v1014 = vmax.f32 %v982, 0.0
  %v1015 = vmax.f32 %v983, 0.0
  %v1016 = vmax.f32 %v984, 0.0
  %v1017 = vmax.f32 %v985, 0.0
  %v1018 = vmax.f32 %v986, 0.0
  %v1019 = vmax.f32 %v987, 0.0
  %v1020 = vmax.f32 %v988, 0.0
  %v1021 = vmax.f32 %v989, 0.0
  %v1022 = vmax.f32 %v990, 0.0
  %v1023 = vmax.f32 %v991, 0.0
  %v1024 = vmax.f32 %v992, 0.0
  %v1025 = vmax.f32 %v993, 0.0
  %v1026 = vmax.f32 %v994, 0.0
  %v1027 = vmax.f32 %v995, 0.0
  %v1028 = vmax.f32 %v996, 0.0
  %v1029 = vmax.f32 %v997, 0.0
  %v1030 = vmax.f32 %v998, 0.0
  %v1031 = vmax.f32 %v999, 0.0
  %v1032 = vpack.c.bf16 %v1001, %v1000
  %v1033 = vpack.c.bf16 %v1003, %v1002
  %v1034 = vpack.c.bf16 %v1005, %v1004
  %v1035 = vpack.c.bf16 %v1007, %v1006
  %v1036 = vpack.c.bf16 %v1009, %v1008
  %v1037 = vpack.c.bf16 %v1011, %v1010
  %v1038 = vpack.c.bf16 %v1013, %v1012
  %v1039 = vpack.c.bf16 %v1015, %v1014
  %v1040 = vpack.c.bf16 %v1017, %v1016
  %v1041 = vpack.c.bf16 %v1019, %v1018
  %v1042 = vpack.c.bf16 %v1021, %v1020
  %v1043 = vpack.c.bf16 %v1023, %v1022
  %v1044 = vpack.c.bf16 %v1025, %v1024
  %v1045 = vpack.c.bf16 %v1027, %v1026
  %v1046 = vpack.c.bf16 %v1029, %v1028
  %v1047 = vpack.c.bf16 %v1031, %v1030
  %v1048 = vld [vmem:[%s4] sm:$0xf]
  %v1049 = vld [vmem:[%s4 + $0x4] sm:$0xf]
  %v1050 = vld [vmem:[%s4 + $0x8] sm:$0xf]
  %v1051 = vld [vmem:[%s4 + $0xc] sm:$0xf]
  %v1052 = vld [vmem:[%s4 + $0x10] sm:$0xf]
  %v1053 = vld [vmem:[%s4 + $0x14] sm:$0xf]
  %v1054 = vld [vmem:[%s4 + $0x18] sm:$0xf]
  %v1055 = vld [vmem:[%s4 + $0x1c] sm:$0xf]
  %v1064 = vunpack.c.l.b16 %v1048
  %v1065 = vunpack.c.l.b16 %v1049
  %v1066 = vunpack.c.l.b16 %v1050
  %v1067 = vunpack.c.l.b16 %v1051
  %v1068 = vunpack.c.l.b16 %v1052
  %v1069 = vunpack.c.l.b16 %v1053
  %v1070 = vunpack.c.l.b16 %v1054
  %v1071 = vunpack.c.l.b16 %v1055
  %v1072 = vpack.c.b16 %v1065, %v1064
  %v1073 = vpack.c.b16 %v1067, %v1066
  %v1074 = vpack.c.b16 %v1069, %v1068
  %v1075 = vpack.c.b16 %v1071, %v1070
  %v1081 = vsel %vm223, %v1032, 0
  %v1084 = vsel %vm223, %v1033, 0
  %v1087 = vsel %vm223, %v1034, 0
  %v1090 = vsel %vm223, %v1035, 0
  %v1093 = vsel %vm223, %v1036, 0
  %v1096 = vsel %vm223, %v1037, 0
  %v1099 = vsel %vm223, %v1038, 0
  %v1102 = vsel %vm223, %v1039, 0
  %v1105 = vsel %vm223, %v1040, 0
  %v1108 = vsel %vm223, %v1041, 0
  %v1111 = vsel %vm223, %v1042, 0
  %v1114 = vsel %vm223, %v1043, 0
  %v1117 = vsel %vm223, %v1044, 0
  %v1120 = vsel %vm223, %v1045, 0
  %v1123 = vsel %vm223, %v1046, 0
  %v1126 = vsel %vm223, %v1047, 0
  %1128 = vmatpush.bf16.msra.mxu0 0
  %1129 = vmatpush.bf16.msra.mxu0 0
  %1130 = vmatpush.bf16.msra.mxu0 0
  %1131 = vmatpush.bf16.msra.mxu0 0
  %1132 = vmatpush.bf16.msra.mxu0 %v1075
  %1133 = vmatpush.bf16.msra.mxu0 %v1074
  %1134 = vmatpush.bf16.msra.mxu0 %v1073
  %1135 = vmatpush.bf16.msra.mxu0 %v1072
  %1136 = vmatmul.bf16.gmra.mxu0 %v1081
  %v1137 = vpop.f32.mrf.mxu0
  %v1138 = vadd.f32 0.0, %v1137
  %v1139 = vpop.f32.mrf.mxu0
  %v1140 = vadd.f32 0.0, %v1139
  %1141 = vmatmul.bf16.gmra.mxu0 %v1084
  %v1142 = vpop.f32.mrf.mxu0
  %v1143 = vadd.f32 0.0, %v1142
  %v1144 = vpop.f32.mrf.mxu0
  %v1145 = vadd.f32 0.0, %v1144
  %1146 = vmatmul.bf16.gmra.mxu0 %v1087
  %v1147 = vpop.f32.mrf.mxu0
  %v1148 = vadd.f32 0.0, %v1147
  %v1149 = vpop.f32.mrf.mxu0
  %v1150 = vadd.f32 0.0, %v1149
  %1151 = vmatmul.bf16.gmra.mxu0 %v1090
  %v1152 = vpop.f32.mrf.mxu0
  %v1153 = vadd.f32 0.0, %v1152
  %v1154 = vpop.f32.mrf.mxu0
  %v1155 = vadd.f32 0.0, %v1154
  %1156 = vmatmul.bf16.gmra.mxu0 %v1093
  %v1157 = vpop.f32.mrf.mxu0
  %v1158 = vadd.f32 0.0, %v1157
  %v1159 = vpop.f32.mrf.mxu0
  %v1160 = vadd.f32 0.0, %v1159
  %1161 = vmatmul.bf16.gmra.mxu0 %v1096
  %v1162 = vpop.f32.mrf.mxu0
  %v1163 = vadd.f32 0.0, %v1162
  %v1164 = vpop.f32.mrf.mxu0
  %v1165 = vadd.f32 0.0, %v1164
  %1166 = vmatmul.bf16.gmra.mxu0 %v1099
  %v1167 = vpop.f32.mrf.mxu0
  %v1168 = vadd.f32 0.0, %v1167
  %v1169 = vpop.f32.mrf.mxu0
  %v1170 = vadd.f32 0.0, %v1169
  %1171 = vmatmul.bf16.gmra.mxu0 %v1102
  %v1172 = vpop.f32.mrf.mxu0
  %v1173 = vadd.f32 0.0, %v1172
  %v1174 = vpop.f32.mrf.mxu0
  %v1175 = vadd.f32 0.0, %v1174
  %1176 = vmatmul.bf16.gmra.mxu0 %v1105
  %v1177 = vpop.f32.mrf.mxu0
  %v1178 = vadd.f32 0.0, %v1177
  %v1179 = vpop.f32.mrf.mxu0
  %v1180 = vadd.f32 0.0, %v1179
  %1181 = vmatmul.bf16.gmra.mxu0 %v1108
  %v1182 = vpop.f32.mrf.mxu0
  %v1183 = vadd.f32 0.0, %v1182
  %v1184 = vpop.f32.mrf.mxu0
  %v1185 = vadd.f32 0.0, %v1184
  %1186 = vmatmul.bf16.gmra.mxu0 %v1111
  %v1187 = vpop.f32.mrf.mxu0
  %v1188 = vadd.f32 0.0, %v1187
  %v1189 = vpop.f32.mrf.mxu0
  %v1190 = vadd.f32 0.0, %v1189
  %1191 = vmatmul.bf16.gmra.mxu0 %v1114
  %v1192 = vpop.f32.mrf.mxu0
  %v1193 = vadd.f32 0.0, %v1192
  %v1194 = vpop.f32.mrf.mxu0
  %v1195 = vadd.f32 0.0, %v1194
  %1196 = vmatmul.bf16.gmra.mxu0 %v1117
  %v1197 = vpop.f32.mrf.mxu0
  %v1198 = vadd.f32 0.0, %v1197
  %v1199 = vpop.f32.mrf.mxu0
  %v1200 = vadd.f32 0.0, %v1199
  %1201 = vmatmul.bf16.gmra.mxu0 %v1120
  %v1202 = vpop.f32.mrf.mxu0
  %v1203 = vadd.f32 0.0, %v1202
  %v1204 = vpop.f32.mrf.mxu0
  %v1205 = vadd.f32 0.0, %v1204
  %1206 = vmatmul.bf16.gmra.mxu0 %v1123
  %v1207 = vpop.f32.mrf.mxu0
  %v1208 = vadd.f32 0.0, %v1207
  %v1209 = vpop.f32.mrf.mxu0
  %v1210 = vadd.f32 0.0, %v1209
  %1211 = vmatmul.bf16.gmra.mxu0 %v1126
  %v1212 = vpop.f32.mrf.mxu0
  %v1213 = vadd.f32 0.0, %v1212
  %v1214 = vpop.f32.mrf.mxu0
  %v1215 = vadd.f32 0.0, %v1214
  %1216 = vdwg.mxu0
  %vm1217 = vcmask 130048
  %1218 = vst.msk [vmem:[%s5] sm:$0xff] %vm1217, %v1138
  %1219 = vst.msk [vmem:[%s5 + $0x8] sm:$0xff] %vm1217, %v1140
  %1220 = vst.msk [vmem:[%s5 + $0x10] sm:$0xff] %vm1217, %v1143
  %1221 = vst.msk [vmem:[%s5 + $0x18] sm:$0xff] %vm1217, %v1145
  %1222 = vst.msk [vmem:[%s5 + $0x20] sm:$0xff] %vm1217, %v1148
  %1223 = vst.msk [vmem:[%s5 + $0x28] sm:$0xff] %vm1217, %v1150
  %1224 = vst.msk [vmem:[%s5 + $0x30] sm:$0xff] %vm1217, %v1153
  %1225 = vst.msk [vmem:[%s5 + $0x38] sm:$0xff] %vm1217, %v1155
  %1226 = vst.msk [vmem:[%s5 + $0x40] sm:$0xff] %vm1217, %v1158
  %1227 = vst.msk [vmem:[%s5 + $0x48] sm:$0xff] %vm1217, %v1160
  %1228 = vst.msk [vmem:[%s5 + $0x50] sm:$0xff] %vm1217, %v1163
  %1229 = vst.msk [vmem:[%s5 + $0x58] sm:$0xff] %vm1217, %v1165
  %1230 = vst.msk [vmem:[%s5 + $0x60] sm:$0xff] %vm1217, %v1168
  %1231 = vst.msk [vmem:[%s5 + $0x68] sm:$0xff] %vm1217, %v1170
  %1232 = vst.msk [vmem:[%s5 + $0x70] sm:$0xff] %vm1217, %v1173
  %1233 = vst.msk [vmem:[%s5 + $0x78] sm:$0xff] %vm1217, %v1175
  %1234 = vst.msk [vmem:[%s5 + $0x80] sm:$0xff] %vm1217, %v1178
  %1235 = vst.msk [vmem:[%s5 + $0x88] sm:$0xff] %vm1217, %v1180
  %1236 = vst.msk [vmem:[%s5 + $0x90] sm:$0xff] %vm1217, %v1183
  %1237 = vst.msk [vmem:[%s5 + $0x98] sm:$0xff] %vm1217, %v1185
  %1238 = vst.msk [vmem:[%s5 + $0xa0] sm:$0xff] %vm1217, %v1188
  %1239 = vst.msk [vmem:[%s5 + $0xa8] sm:$0xff] %vm1217, %v1190
  %1240 = vst.msk [vmem:[%s5 + $0xb0] sm:$0xff] %vm1217, %v1193
  %1241 = vst.msk [vmem:[%s5 + $0xb8] sm:$0xff] %vm1217, %v1195
  %1242 = vst.msk [vmem:[%s5 + $0xc0] sm:$0xff] %vm1217, %v1198
  %1243 = vst.msk [vmem:[%s5 + $0xc8] sm:$0xff] %vm1217, %v1200
  %1244 = vst.msk [vmem:[%s5 + $0xd0] sm:$0xff] %vm1217, %v1203
  %1245 = vst.msk [vmem:[%s5 + $0xd8] sm:$0xff] %vm1217, %v1205
  %1246 = vst.msk [vmem:[%s5 + $0xe0] sm:$0xff] %vm1217, %v1208
  %1247 = vst.msk [vmem:[%s5 + $0xe8] sm:$0xff] %vm1217, %v1210
  %1248 = vst.msk [vmem:[%s5 + $0xf0] sm:$0xff] %vm1217, %v1213
  %1249 = vst.msk [vmem:[%s5 + $0xf8] sm:$0xff] %vm1217, %v1215
  // Predicated region
  $region22: #{tpu_custom_call.1} parent=0 // pred_check
    _
  $region23: #{tpu_custom_call.1} parent=0 // pred_check_branch
    %1251 = sbr.rel (0) target = $region25
  $region24: #{tpu_custom_call.1} parent=0 // pred_region
    _
  $region25: #{tpu_custom_call.1} parent=0 // pred_fallthru
    _
  // Predicated region
  $region26: #{tpu_custom_call.1} parent=0 // pred_check
    _
  $region27: #{tpu_custom_call.1} parent=0 // pred_check_branch
    %1253 = sbr.rel (0) target = $region29
  $region28: #{tpu_custom_call.1} parent=0 // pred_region
    _
  $region29: #{tpu_custom_call.1} parent=0 // pred_fallthru
    _

</llo_original>
